<compile_context>
chip_gen: v7x
topology: tpu7x:2x2x1
jax: 0.10.0
libtpu: 0.0.40
codegen_flags: <defaults>
</compile_context>

<pallas_src>
import jax
import jax.numpy as jnp
from jax.experimental import pallas as pl
from jax.experimental.pallas import tpu as pltpu

_VMEM_LIMIT = 32 * 1024 * 1024   # safe on v5e/v6e/v7x; bump together with larger tiles on v6e
_BN_EPS = 1e-5


def _round_up(x, m):
    return ((x + m - 1) // m) * m


def _pad2d(a, rows, cols):
    r, c = a.shape
    return jnp.pad(a, ((0, rows - r), (0, cols - c)))


# ----------------------------- kernels ------------------------------------ #

def _feat_kernel(x_ref, scale_ref, shift_ref, alpha_ref, w_ref, out_ref):
    """out = PReLU(x * scale + shift; alpha) @ w.

    With scale=1, shift=0, alpha=1 this is a plain x @ w (used for stage A)."""
    z = x_ref[...] * scale_ref[...] + shift_ref[...]
    z = jnp.where(z >= 0.0, z, alpha_ref[...] * z)
    out_ref[...] = jnp.dot(z, w_ref[...],
                           preferred_element_type=jnp.float32).astype(out_ref.dtype)


def _aggr_stats_kernel(adj_ref, h_ref, out_ref, stat_ref, acc_ref):
    """out = adj @ h (f32 accumulation); per-row-block column sum / sum-of-squares
    written into rows 0 / 1 of the (8, F) stats block for the BatchNorm reduction."""
    k = pl.program_id(1)

    @pl.when(k == 0)
    def _init():
        acc_ref[...] = jnp.zeros_like(acc_ref)

    acc_ref[...] += jnp.dot(adj_ref[...], h_ref[...],
                            preferred_element_type=jnp.float32)

    @pl.when(k == pl.num_programs(1) - 1)
    def _finalize():
        acc = acc_ref[...]
        out_ref[...] = acc
        s1 = jnp.sum(acc, axis=0, keepdims=True)
        s2 = jnp.sum(acc * acc, axis=0, keepdims=True)
        pad = jnp.zeros((6, acc.shape[1]), jnp.float32)
        stat_ref[...] = jnp.concatenate([s1, s2, pad], axis=0)


def _aggr_bias_kernel(adj_ref, h_ref, b_ref, out_ref, acc_ref):
    """out = adj @ h + b (f32 accumulation)."""
    k = pl.program_id(1)

    @pl.when(k == 0)
    def _init():
        acc_ref[...] = jnp.zeros_like(acc_ref)

    acc_ref[...] += jnp.dot(adj_ref[...], h_ref[...],
                            preferred_element_type=jnp.float32)

    @pl.when(k == pl.num_programs(1) - 1)
    def _finalize():
        out_ref[...] = acc_ref[...] + b_ref[...]


# --------------------------- pallas wrappers ------------------------------- #

def _feat_matmul(x, scale, shift, alpha_row, w, tile):
    n, fin = x.shape
    fout = w.shape[1]
    return pl.pallas_call(
        _feat_kernel,
        grid=(n // tile,),
        in_specs=[
            pl.BlockSpec((tile, fin), lambda i: (i, 0)),    # x rows
            pl.BlockSpec((1, fin), lambda i: (0, 0)),       # BN scale (or ones)
            pl.BlockSpec((1, fin), lambda i: (0, 0)),       # BN shift (or zeros)
            pl.BlockSpec((1, fin), lambda i: (0, 0)),       # PReLU slope (or ones)
            pl.BlockSpec((fin, fout), lambda i: (0, 0)),    # weights (resident)
        ],
        out_specs=pl.BlockSpec((tile, fout), lambda i: (i, 0)),
        out_shape=jax.ShapeDtypeStruct((n, fout), jnp.bfloat16),
        compiler_params=pltpu.CompilerParams(
            dimension_semantics=("parallel",),
            vmem_limit_bytes=_VMEM_LIMIT),
        cost_estimate=pl.CostEstimate(
            flops=2 * n * fin * fout,
            transcendentals=0,
            bytes_accessed=4 * n * fin + 4 * fin * fout + 2 * n * fout),
    )(x, scale, shift, alpha_row, w)


def _aggregate_with_stats(adj, h, tile):
    n = adj.shape[0]
    f = h.shape[1]
    nblk = n // tile
    out, stats = pl.pallas_call(
        _aggr_stats_kernel,
        grid=(nblk, nblk),
        in_specs=[
            pl.BlockSpec((tile, tile), lambda i, k: (i, k)),   # adj tile (bf16)
            pl.BlockSpec((tile, f), lambda i, k: (k, 0)),      # feature rows (bf16)
        ],
        out_specs=(
            pl.BlockSpec((tile, f), lambda i, k: (i, 0)),      # aggregated rows (f32)
            pl.BlockSpec((8, f), lambda i, k: (i, 0)),         # per-row-block BN stats
        ),
        out_shape=(
            jax.ShapeDtypeStruct((n, f), jnp.float32),
            jax.ShapeDtypeStruct((nblk * 8, f), jnp.float32),
        ),
        scratch_shapes=[pltpu.VMEM((tile, f), jnp.float32)],
        compiler_params=pltpu.CompilerParams(
            dimension_semantics=("parallel", "arbitrary"),
            vmem_limit_bytes=_VMEM_LIMIT),
        cost_estimate=pl.CostEstimate(
            flops=2 * n * n * f,
            transcendentals=0,
            bytes_accessed=2 * n * n + 2 * n * f + 4 * n * f),
    )(adj, h)
    return out, stats


def _aggregate_with_bias(adj, h, b, tile):
    n = adj.shape[0]
    f = h.shape[1]
    nblk = n // tile
    return pl.pallas_call(
        _aggr_bias_kernel,
        grid=(nblk, nblk),
        in_specs=[
            pl.BlockSpec((tile, tile), lambda i, k: (i, k)),
            pl.BlockSpec((tile, f), lambda i, k: (k, 0)),
            pl.BlockSpec((1, f), lambda i, k: (0, 0)),
        ],
        out_specs=pl.BlockSpec((tile, f), lambda i, k: (i, 0)),
        out_shape=jax.ShapeDtypeStruct((n, f), jnp.float32),
        scratch_shapes=[pltpu.VMEM((tile, f), jnp.float32)],
        compiler_params=pltpu.CompilerParams(
            dimension_semantics=("parallel", "arbitrary"),
            vmem_limit_bytes=_VMEM_LIMIT),
        cost_estimate=pl.CostEstimate(
            flops=2 * n * n * f,
            transcendentals=0,
            bytes_accessed=2 * n * n + 2 * n * f + 4 * n * f),
    )(adj, h, b)


# ------------------------------ GConv forward ------------------------------ #

def gcn_normalized_adjacency(edge_index, edge_weight, num_nodes):
    """Dense D^-1/2 (A + I) D^-1/2 matching PyG gcn_norm (add_self_loops=True)."""
    src, dst = edge_index[0], edge_index[1]
    if edge_weight is None:
        edge_weight = jnp.ones(src.shape[0], dtype=jnp.float32)
    adj = jnp.zeros((num_nodes, num_nodes), dtype=jnp.float32)
    adj = adj.at[dst, src].add(edge_weight)            # messages flow src -> dst
    adj = adj + jnp.eye(num_nodes, dtype=jnp.float32)  # self loops, weight 1
    deg = jnp.sum(adj, axis=1)
    dis = jnp.where(deg > 0, jax.lax.rsqrt(deg), 0.0)
    return dis[:, None] * adj * dis[None, :]


def gconv_forward(x, edge_index, params, edge_weight=None, *, tile=128, feat_pad=128):
    """GCNConv(Fin->2H) -> BatchNorm1d (training-mode batch stats) -> PReLU -> GCNConv(2H->H).

    tile: row / contraction block for the adjacency matmuls (128 for v5e, 256+ on v6e/v7x).
    """
    n, fin = x.shape
    w1, gamma, beta = params["w1"], params["gamma"], params["beta"]
    a_prelu, w2, b2 = params["a_prelu"], params["w2"], params["b2"]
    f1 = w1.shape[1]     # 2H
    f2 = w2.shape[1]     # H

    n_p = _round_up(n, tile)
    fin_p = _round_up(fin, feat_pad)
    f1_p = _round_up(f1, feat_pad)
    f2_p = _round_up(f2, feat_pad)

    # Graph preprocessing glue (plain-JAX scatter) + bf16 cast of the O(N^2) operand.
    adj = gcn_normalized_adjacency(edge_index, edge_weight, n)
    adj_p = _pad2d(adj, n_p, n_p).astype(jnp.bfloat16)

    x_p = _pad2d(x.astype(jnp.float32), n_p, fin_p)
    w1_p = _pad2d(w1, fin_p, f1_p)
    w2_p = _pad2d(w2, f1_p, f2_p)
    b2_p = _pad2d(b2.reshape(1, -1), 1, f2_p)
    gamma_p = jnp.pad(gamma.reshape(-1), (0, f1_p - f1))
    beta_p = jnp.pad(beta.reshape(-1), (0, f1_p - f1))

    ones_fin = jnp.ones((1, fin_p), jnp.float32)
    zeros_fin = jnp.zeros((1, fin_p), jnp.float32)

    # Stage A: xw1 = x @ W1.  conv1's bias b1 is mathematically cancelled by the
    # training-mode BatchNorm mean subtraction, so it is folded away (no-op).
    xw1 = _feat_matmul(x_p, ones_fin, zeros_fin, ones_fin, w1_p, tile)

    # Stage B: h = adj @ xw1, with fused per-row-block BatchNorm statistics.
    h, stats = _aggregate_with_stats(adj_p, xw1, tile)

    # BatchNorm finalize: tiny [2H] math. Padded rows of h are exactly zero, so the
    # accumulated sums only see the n real rows; divide by the true node count.
    stats = stats.reshape(n_p // tile, 8, f1_p)
    cnt = jnp.float32(n)
    mean = jnp.sum(stats[:, 0, :], axis=0) / cnt
    var = jnp.maximum(jnp.sum(stats[:, 1, :], axis=0) / cnt - mean * mean, 0.0)
    inv = jax.lax.rsqrt(var + _BN_EPS)
    scale = (gamma_p * inv).reshape(1, f1_p)
    shift = (beta_p - mean * gamma_p * inv).reshape(1, f1_p)
    alpha_row = jnp.full((1, f1_p), a_prelu[0], jnp.float32)

    # Stage C: zw2 = PReLU(h * scale + shift) @ W2  (BN + PReLU fused into the matmul pass).
    zw2 = _feat_matmul(h, scale, shift, alpha_row, w2_p, tile)

    # Stage D: out = adj @ zw2 + b2.
    out_p = _aggregate_with_bias(adj_p, zw2, b2_p, tile)
    return out_p[:n, :f2]


# ------------------------------ reference & init --------------------------- #

def gconv_reference(x, edge_index, params, edge_weight=None):
    """Pure f32 JAX reference of the same forward (training-mode BatchNorm)."""
    adj = gcn_normalized_adjacency(edge_index, edge_weight, x.shape[0])
    h = adj @ (x @ params["w1"]) + params["b1"]
    mean = jnp.mean(h, axis=0, keepdims=True)
    var = jnp.mean((h - mean) ** 2, axis=0, keepdims=True)
    z = (h - mean) * jax.lax.rsqrt(var + _BN_EPS) * params["gamma"] + params["beta"]
    a = params["a_prelu"][0]
    z = jnp.where(z >= 0.0, z, a * z)
    return adj @ (z @ params["w2"]) + params["b2"]


def init_params(key, input_dim, hidden_dim):
    k1, k2 = jax.random.split(key, 2)
    two_h = 2 * hidden_dim
    s1 = (6.0 / (input_dim + two_h)) ** 0.5      # glorot-like, deterministic
    s2 = (6.0 / (two_h + hidden_dim)) ** 0.5
    return {
        "w1": jax.random.uniform(k1, (input_dim, two_h), jnp.float32, -s1, s1),
        "b1": jnp.zeros((1, two_h), jnp.float32),        # cancelled by BN (kept for parity)
        "gamma": jnp.ones((1, two_h), jnp.float32),      # BatchNorm1d weight
        "beta": jnp.zeros((1, two_h), jnp.float32),      # BatchNorm1d bias
        "a_prelu": jnp.full((1,), 0.25, jnp.float32),    # PReLU default init
        "w2": jax.random.uniform(k2, (two_h, hidden_dim), jnp.float32, -s2, s2),
        "b2": jnp.zeros((1, hidden_dim), jnp.float32),
    }


# TODO(synk): BatchNorm1d running-stats update (momentum=0.01) is a training-state side
# effect and is not materialized here; the forward uses training-mode batch statistics.

if __name__ == "__main__":
    key = jax.random.PRNGKey(0)
    kx, ke, kp = jax.random.split(key, 3)

    num_nodes = 16
    num_edges = 32
    input_dim = 32
    hidden_dim = 16

    x = jax.random.normal(kx, (num_nodes, input_dim), dtype=jnp.float32)
    edge_index = jax.random.randint(ke, (2, num_edges), 0, num_nodes, dtype=jnp.int32)
    params = init_params(kp, input_dim, hidden_dim)

    out = gconv_forward(x, edge_index, params, tile=128)
    jax.block_until_ready(out)

    assert out.shape == (num_nodes, hidden_dim) and out.dtype == jnp.float32
    ref = gconv_reference(x, edge_index, params)
    err = float(jnp.max(jnp.abs(out - ref)))
    assert jnp.isfinite(out).all(), "non-finite output"
    assert err < 0.2, f"max abs err vs f32 reference too large: {err}"
    print("KERNEL_OK")
</pallas_src>

<mosaic_0001>
module attributes {stable_mosaic.version = 11 : i64} {
  func.func @_feat_kernel(%arg0: i32, %arg1: memref<128x128xf32, #tpu.memory_space<vmem>>, %arg2: memref<1x128xf32, #tpu.memory_space<vmem>>, %arg3: memref<1x128xf32, #tpu.memory_space<vmem>>, %arg4: memref<1x128xf32, #tpu.memory_space<vmem>>, %arg5: memref<128x128xf32, #tpu.memory_space<vmem>>, %arg6: memref<128x128xbf16, #tpu.memory_space<vmem>>) attributes {dimension_semantics = [#tpu.dimension_semantics<parallel>], iteration_bounds = array<i64: 1>, scalar_prefetch = 0 : i64, scratch_operands = 0 : i64, tpu.core_type = #tpu.core_type<tc>, window_params = [{transform_indices = @transform_0, window_bounds = array<i64: 128, 128>}, {pipeline_mode = #tpu.pipeline_mode<synchronous>, transform_indices = @transform_1, window_bounds = array<i64: 1, 128>}, {pipeline_mode = #tpu.pipeline_mode<synchronous>, transform_indices = @transform_2, window_bounds = array<i64: 1, 128>}, {pipeline_mode = #tpu.pipeline_mode<synchronous>, transform_indices = @transform_3, window_bounds = array<i64: 1, 128>}, {pipeline_mode = #tpu.pipeline_mode<synchronous>, transform_indices = @transform_4, window_bounds = array<i64: 128, 128>}, {transform_indices = @transform_5, window_bounds = array<i64: 128, 128>}]} {
    %c0 = arith.constant 0 : index
    %c0_0 = arith.constant 0 : index
    %0 = vector.load %arg1[%c0, %c0_0] : memref<128x128xf32, #tpu.memory_space<vmem>>, vector<128x128xf32>
    %c0_1 = arith.constant 0 : index
    %c0_2 = arith.constant 0 : index
    %1 = vector.load %arg2[%c0_1, %c0_2] : memref<1x128xf32, #tpu.memory_space<vmem>>, vector<1x128xf32>
    %2 = vector.broadcast %1 : vector<1x128xf32> to vector<128x128xf32>
    %3 = arith.mulf %0, %2 : vector<128x128xf32>
    %c0_3 = arith.constant 0 : index
    %c0_4 = arith.constant 0 : index
    %4 = vector.load %arg3[%c0_3, %c0_4] : memref<1x128xf32, #tpu.memory_space<vmem>>, vector<1x128xf32>
    %5 = vector.broadcast %4 : vector<1x128xf32> to vector<128x128xf32>
    %6 = arith.addf %3, %5 : vector<128x128xf32>
    %cst = arith.constant 0.000000e+00 : f32
    %7 = vector.broadcast %cst : f32 to vector<128x128xf32>
    %8 = arith.cmpf oge, %6, %7 : vector<128x128xf32>
    %c0_5 = arith.constant 0 : index
    %c0_6 = arith.constant 0 : index
    %9 = vector.load %arg4[%c0_5, %c0_6] : memref<1x128xf32, #tpu.memory_space<vmem>>, vector<1x128xf32>
    %10 = vector.broadcast %9 : vector<1x128xf32> to vector<128x128xf32>
    %11 = arith.mulf %10, %6 : vector<128x128xf32>
    %12 = arith.select %8, %6, %11 : vector<128x128xi1>, vector<128x128xf32>
    %c0_7 = arith.constant 0 : index
    %c0_8 = arith.constant 0 : index
    %13 = vector.load %arg5[%c0_7, %c0_8] : memref<128x128xf32, #tpu.memory_space<vmem>>, vector<128x128xf32>
    %cst_9 = arith.constant dense<0.000000e+00> : vector<128x128xf32>
    %14 = tpu.matmul %12, %13, %cst_9 {dimension_numbers = #tpu.dot_dimension_numbers<[1], [0], [0], [1], [0, 0, 1, 1], [], []>} : vector<128x128xf32>, vector<128x128xf32>, vector<128x128xf32> -> vector<128x128xf32>
    %15 = arith.truncf %14 : vector<128x128xf32> to vector<128x128xbf16>
    %c0_10 = arith.constant 0 : index
    %c0_11 = arith.constant 0 : index
    %16 = vector.load %arg6[%c0_10, %c0_11] : memref<128x128xbf16, #tpu.memory_space<vmem>>, vector<128x128xbf16>
    tpu.vector_store %arg6[%c0_10, %c0_11], %15 {strides = array<i32>} : memref<128x128xbf16, #tpu.memory_space<vmem>>, vector<128x128xbf16>,
    return
  }
  func.func @transform_0(%arg0: i32) -> (i32, i32) {
    %c0_i32 = arith.constant 0 : i32
    %c0_i32_0 = arith.constant 0 : i32
    return %arg0, %c0_i32 : i32, i32
  }
  func.func @transform_1(%arg0: i32) -> (i32, i32) {
    %c0_i32 = arith.constant 0 : i32
    %c0_i32_0 = arith.constant 0 : i32
    %c0_i32_1 = arith.constant 0 : i32
    return %c0_i32, %c0_i32_0 : i32, i32
  }
  func.func @transform_2(%arg0: i32) -> (i32, i32) {
    %c0_i32 = arith.constant 0 : i32
    %c0_i32_0 = arith.constant 0 : i32
    %c0_i32_1 = arith.constant 0 : i32
    return %c0_i32, %c0_i32_0 : i32, i32
  }
  func.func @transform_3(%arg0: i32) -> (i32, i32) {
    %c0_i32 = arith.constant 0 : i32
    %c0_i32_0 = arith.constant 0 : i32
    %c0_i32_1 = arith.constant 0 : i32
    return %c0_i32, %c0_i32_0 : i32, i32
  }
  func.func @transform_4(%arg0: i32) -> (i32, i32) {
    %c0_i32 = arith.constant 0 : i32
    %c0_i32_0 = arith.constant 0 : i32
    %c0_i32_1 = arith.constant 0 : i32
    return %c0_i32, %c0_i32_0 : i32, i32
  }
  func.func @transform_5(%arg0: i32) -> (i32, i32) {
    %c0_i32 = arith.constant 0 : i32
    %c0_i32_0 = arith.constant 0 : i32
    return %arg0, %c0_i32 : i32, i32
  }
}

</mosaic_0001>

<llo_original>
// kernel: tpu_custom_call.1
$region0: #{tpu_custom_call.1}
  #allocation0 [shape = 'u32[]', space=smem, size = 0x4, offset = 0x4, fixed_abs, tag = 'smem constant byte address 0x4 - core index']
  #allocation1 [shape = 'u32[144,128]{1,0:T(1,128)}', space=vmem, size = 0x12000, scoped, tag = 'internal scratch']
  %s0 = inlined_call_operand.hbm [shape: f32[128,128], index: 0, kind: input, shape index: {}]
  %s1 = inlined_call_operand.vmem [shape: f32[1,128], index: 1, kind: input, shape index: {}]
  %s2 = inlined_call_operand.vmem [shape: f32[1,128], index: 2, kind: input, shape index: {}]
  %s3 = inlined_call_operand.vmem [shape: f32[1,128], index: 3, kind: input, shape index: {}]
  %s4 = inlined_call_operand.hbm [shape: f32[128,128], index: 4, kind: input, shape index: {}]
  %s5 = inlined_call_operand.hbm [shape: bf16[128,128], index: 5, kind: output, shape index: {}]
  %s6 = sld [smem:[#allocation0]]
  $region38: #{tpu_custom_call.1} parent=0
    _
  %s8 = ssub.s32 1, %s6
  %s9 = scalar_select 0, %s8, %s6
  $region1: #{tpu_custom_call.1} parent=0
    #allocation2 [shape = 'u8[65536]{0}', space=vmem, size = 0x10000, scoped, tag = 'input window, operand 0, single buffered']
    #allocation3 [shape = 's32[1]{0}', space=sflag, size = 0x4, scoped, tag = 'scoped memory for tpu_custom_call.1']
    #allocation4 [shape = 's32[1]{0}', space=sflag, size = 0x4, scoped, tag = 'scoped memory for tpu_custom_call.1']
    #allocation5 [shape = 'u8[65536]{0}', space=vmem, size = 0x10000, scoped, tag = 'input window, operand 4, single buffered']
    #allocation6 [shape = 's32[1]{0}', space=sflag, size = 0x4, scoped, tag = 'scoped memory for tpu_custom_call.1']
    #allocation7 [shape = 'u8[32768]{0}', space=vmem, size = 0x8000, scoped, tag = 'output window, operand 0, single buffered']
    %10 = vsyncpa [#allocation3], 0
    %11 = vsyncpa [#allocation6], 0
    %12 = vsyncpa [#allocation4], 0
    // Predicated region
    $region2: #{tpu_custom_call.1} parent=1 // pred_check
      _
    $region3: #{tpu_custom_call.1} parent=1 // pred_check_branch
      %14 = sbr.rel (0) target = $region5
    $region4: #{tpu_custom_call.1} parent=1 // pred_region
      %s16 = ssub.s32 2048, 2048
      %17 = vsyncadd [#allocation3], %s16
      %s18 = sshll.u32 [#allocation2], 4
      %s19 = int_to_ptr.vmem [resolvable:$true] %s18
      %24 = dma.hbm_to_vmem [thread:$0]  %s0, 2048, %s19, [#allocation3], 128, 128, 8
    $region5: #{tpu_custom_call.1} parent=1 // pred_fallthru
      _
    // Predicated region
    $region6: #{tpu_custom_call.1} parent=1 // pred_check
      _
    $region7: #{tpu_custom_call.1} parent=1 // pred_check_branch
      %26 = sbr.rel (0) target = $region9
    $region8: #{tpu_custom_call.1} parent=1 // pred_region
      _
    $region9: #{tpu_custom_call.1} parent=1 // pred_fallthru
      _
    // Predicated region
    $region10: #{tpu_custom_call.1} parent=1 // pred_check
      _
    $region11: #{tpu_custom_call.1} parent=1 // pred_check_branch
      %28 = sbr.rel (0) target = $region13
    $region12: #{tpu_custom_call.1} parent=1 // pred_region
      _
    $region13: #{tpu_custom_call.1} parent=1 // pred_fallthru
      _
    // Predicated region
    $region14: #{tpu_custom_call.1} parent=1 // pred_check
      _
    $region15: #{tpu_custom_call.1} parent=1 // pred_check_branch
      %30 = sbr.rel (0) target = $region17
    $region16: #{tpu_custom_call.1} parent=1 // pred_region
      _
    $region17: #{tpu_custom_call.1} parent=1 // pred_fallthru
      _
    // Predicated region
    $region18: #{tpu_custom_call.1} parent=1 // pred_check
      _
    $region19: #{tpu_custom_call.1} parent=1 // pred_check_branch
      %32 = sbr.rel (0) target = $region21
    $region20: #{tpu_custom_call.1} parent=1 // pred_region
      %s34 = ssub.s32 2048, 2048
      %35 = vsyncadd [#allocation6], %s34
      %s36 = sshll.u32 [#allocation5], 4
      %s37 = int_to_ptr.vmem [resolvable:$true] %s36
      %42 = dma.hbm_to_vmem [thread:$0]  %s4, 2048, %s37, [#allocation6], 128, 128, 8
    $region21: #{tpu_custom_call.1} parent=1 // pred_fallthru
      _
    // Predicated region
    $region22: #{tpu_custom_call.1} parent=1 // pred_check
      _
    $region23: #{tpu_custom_call.1} parent=1 // pred_check_branch
      %44 = sbr.rel (0) target = $region25
    $region24: #{tpu_custom_call.1} parent=1 // pred_region
      %45 = dma.done [#allocation3], 2048
    $region25: #{tpu_custom_call.1} parent=1 // pred_fallthru
      _
    // Predicated region
    $region26: #{tpu_custom_call.1} parent=1 // pred_check
      _
    $region27: #{tpu_custom_call.1} parent=1 // pred_check_branch
      %47 = sbr.rel (0) target = $region29
    $region28: #{tpu_custom_call.1} parent=1 // pred_region
      %48 = dma.done [#allocation6], 2048
    $region29: #{tpu_custom_call.1} parent=1 // pred_fallthru
      _
    %v49 = vld [vmem:[#allocation2] sm:$0xff]
    %v50 = vld [vmem:[#allocation2 + $0x8] sm:$0xff]
    %v51 = vld [vmem:[#allocation2 + $0x10] sm:$0xff]
    %v52 = vld [vmem:[#allocation2 + $0x18] sm:$0xff]
    %v53 = vld [vmem:[#allocation2 + $0x20] sm:$0xff]
    %v54 = vld [vmem:[#allocation2 + $0x28] sm:$0xff]
    %v55 = vld [vmem:[#allocation2 + $0x30] sm:$0xff]
    %v56 = vld [vmem:[#allocation2 + $0x38] sm:$0xff]
    %v57 = vld [vmem:[#allocation2 + $0x40] sm:$0xff]
    %v58 = vld [vmem:[#allocation2 + $0x48] sm:$0xff]
    %v59 = vld [vmem:[#allocation2 + $0x50] sm:$0xff]
    %v60 = vld [vmem:[#allocation2 + $0x58] sm:$0xff]
    %v61 = vld [vmem:[#allocation2 + $0x60] sm:$0xff]
    %v62 = vld [vmem:[#allocation2 + $0x68] sm:$0xff]
    %v63 = vld [vmem:[#allocation2 + $0x70] sm:$0xff]
    %v64 = vld [vmem:[#allocation2 + $0x78] sm:$0xff]
    %v65 = vld [vmem:[%s1] sm:$0x1]
    %v67 = vlaneseq
    %v68 = vshrl.u32 %v67, 7
    %v69 = vsub.s32 0, %v68
    %v70 = vrot.slane %v65, %v69
    %v72 = vmul.f32 %v49, %v70
    %v73 = vmul.f32 %v50, %v70
    %v74 = vmul.f32 %v51, %v70
    %v75 = vmul.f32 %v52, %v70
    %v76 = vmul.f32 %v53, %v70
    %v77 = vmul.f32 %v54, %v70
    %v78 = vmul.f32 %v55, %v70
    %v79 = vmul.f32 %v56, %v70
    %v80 = vmul.f32 %v57, %v70
    %v81 = vmul.f32 %v58, %v70
    %v82 = vmul.f32 %v59, %v70
    %v83 = vmul.f32 %v60, %v70
    %v84 = vmul.f32 %v61, %v70
    %v85 = vmul.f32 %v62, %v70
    %v86 = vmul.f32 %v63, %v70
    %v87 = vmul.f32 %v64, %v70
    %v88 = vld [vmem:[%s2] sm:$0x1]
    %v90 = vlaneseq
    %v91 = vshrl.u32 %v90, 7
    %v92 = vsub.s32 0, %v91
    %v93 = vrot.slane %v88, %v92
    %v95 = vadd.f32 %v72, %v93
    %v96 = vadd.f32 %v73, %v93
    %v97 = vadd.f32 %v74, %v93
    %v98 = vadd.f32 %v75, %v93
    %v99 = vadd.f32 %v76, %v93
    %v100 = vadd.f32 %v77, %v93
    %v101 = vadd.f32 %v78, %v93
    %v102 = vadd.f32 %v79, %v93
    %v103 = vadd.f32 %v80, %v93
    %v104 = vadd.f32 %v81, %v93
    %v105 = vadd.f32 %v82, %v93
    %v106 = vadd.f32 %v83, %v93
    %v107 = vadd.f32 %v84, %v93
    %v108 = vadd.f32 %v85, %v93
    %v109 = vadd.f32 %v86, %v93
    %v110 = vadd.f32 %v87, %v93
    %vm111 = vcmp.ge.f32.partialorder %v95, 0.0
    %vm112 = vcmp.ge.f32.partialorder %v96, 0.0
    %vm113 = vcmp.ge.f32.partialorder %v97, 0.0
    %vm114 = vcmp.ge.f32.partialorder %v98, 0.0
    %vm115 = vcmp.ge.f32.partialorder %v99, 0.0
    %vm116 = vcmp.ge.f32.partialorder %v100, 0.0
    %vm117 = vcmp.ge.f32.partialorder %v101, 0.0
    %vm118 = vcmp.ge.f32.partialorder %v102, 0.0
    %vm119 = vcmp.ge.f32.partialorder %v103, 0.0
    %vm120 = vcmp.ge.f32.partialorder %v104, 0.0
    %vm121 = vcmp.ge.f32.partialorder %v105, 0.0
    %vm122 = vcmp.ge.f32.partialorder %v106, 0.0
    %vm123 = vcmp.ge.f32.partialorder %v107, 0.0
    %vm124 = vcmp.ge.f32.partialorder %v108, 0.0
    %vm125 = vcmp.ge.f32.partialorder %v109, 0.0
    %vm126 = vcmp.ge.f32.partialorder %v110, 0.0
    %v127 = vld [vmem:[%s3] sm:$0x1]
    %v129 = vlaneseq
    %v130 = vshrl.u32 %v129, 7
    %v131 = vsub.s32 0, %v130
    %v132 = vrot.slane %v127, %v131
    %v134 = vmul.f32 %v132, %v95
    %v135 = vmul.f32 %v132, %v96
    %v136 = vmul.f32 %v132, %v97
    %v137 = vmul.f32 %v132, %v98
    %v138 = vmul.f32 %v132, %v99
    %v139 = vmul.f32 %v132, %v100
    %v140 = vmul.f32 %v132, %v101
    %v141 = vmul.f32 %v132, %v102
    %v142 = vmul.f32 %v132, %v103
    %v143 = vmul.f32 %v132, %v104
    %v144 = vmul.f32 %v132, %v105
    %v145 = vmul.f32 %v132, %v106
    %v146 = vmul.f32 %v132, %v107
    %v147 = vmul.f32 %v132, %v108
    %v148 = vmul.f32 %v132, %v109
    %v149 = vmul.f32 %v132, %v110
    %v150 = vsel %vm111, %v95, %v134
    %v151 = vsel %vm112, %v96, %v135
    %v152 = vsel %vm113, %v97, %v136
    %v153 = vsel %vm114, %v98, %v137
    %v154 = vsel %vm115, %v99, %v138
    %v155 = vsel %vm116, %v100, %v139
    %v156 = vsel %vm117, %v101, %v140
    %v157 = vsel %vm118, %v102, %v141
    %v158 = vsel %vm119, %v103, %v142
    %v159 = vsel %vm120, %v104, %v143
    %v160 = vsel %vm121, %v105, %v144
    %v161 = vsel %vm122, %v106, %v145
    %v162 = vsel %vm123, %v107, %v146
    %v163 = vsel %vm124, %v108, %v147
    %v164 = vsel %vm125, %v109, %v148
    %v165 = vsel %vm126, %v110, %v149
    %v166 = vld [vmem:[#allocation5] sm:$0xff]
    %v167 = vld [vmem:[#allocation5 + $0x8] sm:$0xff]
    %v168 = vld [vmem:[#allocation5 + $0x10] sm:$0xff]
    %v169 = vld [vmem:[#allocation5 + $0x18] sm:$0xff]
    %v170 = vld [vmem:[#allocation5 + $0x20] sm:$0xff]
    %v171 = vld [vmem:[#allocation5 + $0x28] sm:$0xff]
    %v172 = vld [vmem:[#allocation5 + $0x30] sm:$0xff]
    %v173 = vld [vmem:[#allocation5 + $0x38] sm:$0xff]
    %v174 = vld [vmem:[#allocation5 + $0x40] sm:$0xff]
    %v175 = vld [vmem:[#allocation5 + $0x48] sm:$0xff]
    %v176 = vld [vmem:[#allocation5 + $0x50] sm:$0xff]
    %v177 = vld [vmem:[#allocation5 + $0x58] sm:$0xff]
    %v178 = vld [vmem:[#allocation5 + $0x60] sm:$0xff]
    %v179 = vld [vmem:[#allocation5 + $0x68] sm:$0xff]
    %v180 = vld [vmem:[#allocation5 + $0x70] sm:$0xff]
    %v181 = vld [vmem:[#allocation5 + $0x78] sm:$0xff]
    %182 = vmatprep.subr.mxu0 0.0
    %183 = vmatpush1.msra.mxu0 %v166
    %184 = vmatprep.subr.mxu0 0.0
    %185 = vmatpush1.msra.mxu0 %v167
    %186 = vmatprep.subr.mxu0 0.0
    %187 = vmatpush1.msra.mxu0 %v168
    %188 = vmatprep.subr.mxu0 0.0
    %189 = vmatpush1.msra.mxu0 %v169
    %190 = vmatprep.subr.mxu0 0.0
    %191 = vmatpush1.msra.mxu0 %v170
    %192 = vmatprep.subr.mxu0 0.0
    %193 = vmatpush1.msra.mxu0 %v171
    %194 = vmatprep.subr.mxu0 0.0
    %195 = vmatpush1.msra.mxu0 %v172
    %196 = vmatprep.subr.mxu0 0.0
    %197 = vmatpush1.msra.mxu0 %v173
    %198 = vmatprep.subr.mxu0 0.0
    %199 = vmatpush1.msra.mxu0 %v174
    %200 = vmatprep.subr.mxu0 0.0
    %201 = vmatpush1.msra.mxu0 %v175
    %202 = vmatprep.subr.mxu0 0.0
    %203 = vmatpush1.msra.mxu0 %v176
    %204 = vmatprep.subr.mxu0 0.0
    %205 = vmatpush1.msra.mxu0 %v177
    %206 = vmatprep.subr.mxu0 0.0
    %207 = vmatpush1.msra.mxu0 %v178
    %208 = vmatprep.subr.mxu0 0.0
    %209 = vmatpush1.msra.mxu0 %v179
    %210 = vmatprep.subr.mxu0 0.0
    %211 = vmatpush1.msra.mxu0 %v180
    %212 = vmatprep.subr.mxu0 0.0
    %213 = vmatpush1.msra.mxu0 %v181
    %214 = vmatprep.subr.mxu0 0.0
    %215 = vmatpush1.msra.mxu0 0.0
    %216 = vmatprep.subr.mxu0 0.0
    %217 = vmatpush1.msra.mxu0 0.0
    %218 = vmatprep.subr.mxu0 0.0
    %219 = vmatpush1.msra.mxu0 0.0
    %220 = vmatprep.subr.mxu0 0.0
    %221 = vmatpush1.msra.mxu0 0.0
    %222 = vmatprep.subr.mxu0 0.0
    %223 = vmatpush1.msra.mxu0 0.0
    %224 = vmatprep.subr.mxu0 0.0
    %225 = vmatpush1.msra.mxu0 0.0
    %226 = vmatprep.subr.mxu0 0.0
    %227 = vmatpush1.msra.mxu0 0.0
    %228 = vmatprep.subr.mxu0 0.0
    %229 = vmatpush1.msra.mxu0 0.0
    %230 = vmatprep.subr.mxu0 0.0
    %231 = vmatpush1.msra.mxu0 0.0
    %232 = vmatprep.subr.mxu0 0.0
    %233 = vmatpush1.msra.mxu0 0.0
    %234 = vmatprep.subr.mxu0 0.0
    %235 = vmatpush1.msra.mxu0 0.0
    %236 = vmatprep.subr.mxu0 0.0
    %237 = vmatpush1.msra.mxu0 0.0
    %238 = vmatprep.subr.mxu0 0.0
    %239 = vmatpush1.msra.mxu0 0.0
    %240 = vmatprep.subr.mxu0 0.0
    %241 = vmatpush1.msra.mxu0 0.0
    %242 = vmatprep.subr.mxu0 0.0
    %243 = vmatpush1.msra.mxu0 0.0
    %244 = vmatprep.subr.mxu0 0.0
    %245 = vmatpush1.msra.mxu0 0.0
    %246 = vmatprep.mubr.f32.mxu0 0.0
    %247 = vmatmul.mubr.f32.gmra.mrb[0].mxu0 %v150
    %v248 = vpop.f32.mrb[0].mxu0
    %v249 = vadd.f32 0.0, %v248
    %v250 = vpop.f32.mrb[0].mxu0
    %251 = vmatprep.mubr.f32.mxu0 0.0
    %252 = vmatmul.mubr.f32.gmra.mrb[0].mxu0 %v151
    %v253 = vpop.f32.mrb[0].mxu0
    %v254 = vadd.f32 0.0, %v253
    %v255 = vpop.f32.mrb[0].mxu0
    %256 = vmatprep.mubr.f32.mxu0 0.0
    %257 = vmatmul.mubr.f32.gmra.mrb[0].mxu0 %v152
    %v258 = vpop.f32.mrb[0].mxu0
    %v259 = vadd.f32 0.0, %v258
    %v260 = vpop.f32.mrb[0].mxu0
    %261 = vmatprep.mubr.f32.mxu0 0.0
    %262 = vmatmul.mubr.f32.gmra.mrb[0].mxu0 %v153
    %v263 = vpop.f32.mrb[0].mxu0
    %v264 = vadd.f32 0.0, %v263
    %v265 = vpop.f32.mrb[0].mxu0
    %266 = vmatprep.mubr.f32.mxu0 0.0
    %267 = vmatmul.mubr.f32.gmra.mrb[0].mxu0 %v154
    %v268 = vpop.f32.mrb[0].mxu0
    %v269 = vadd.f32 0.0, %v268
    %v270 = vpop.f32.mrb[0].mxu0
    %271 = vmatprep.mubr.f32.mxu0 0.0
    %272 = vmatmul.mubr.f32.gmra.mrb[0].mxu0 %v155
    %v273 = vpop.f32.mrb[0].mxu0
    %v274 = vadd.f32 0.0, %v273
    %v275 = vpop.f32.mrb[0].mxu0
    %276 = vmatprep.mubr.f32.mxu0 0.0
    %277 = vmatmul.mubr.f32.gmra.mrb[0].mxu0 %v156
    %v278 = vpop.f32.mrb[0].mxu0
    %v279 = vadd.f32 0.0, %v278
    %v280 = vpop.f32.mrb[0].mxu0
    %281 = vmatprep.mubr.f32.mxu0 0.0
    %282 = vmatmul.mubr.f32.gmra.mrb[0].mxu0 %v157
    %v283 = vpop.f32.mrb[0].mxu0
    %v284 = vadd.f32 0.0, %v283
    %v285 = vpop.f32.mrb[0].mxu0
    %286 = vmatprep.mubr.f32.mxu0 0.0
    %287 = vmatmul.mubr.f32.gmra.mrb[0].mxu0 %v158
    %v288 = vpop.f32.mrb[0].mxu0
    %v289 = vadd.f32 0.0, %v288
    %v290 = vpop.f32.mrb[0].mxu0
    %291 = vmatprep.mubr.f32.mxu0 0.0
    %292 = vmatmul.mubr.f32.gmra.mrb[0].mxu0 %v159
    %v293 = vpop.f32.mrb[0].mxu0
    %v294 = vadd.f32 0.0, %v293
    %v295 = vpop.f32.mrb[0].mxu0
    %296 = vmatprep.mubr.f32.mxu0 0.0
    %297 = vmatmul.mubr.f32.gmra.mrb[0].mxu0 %v160
    %v298 = vpop.f32.mrb[0].mxu0
    %v299 = vadd.f32 0.0, %v298
    %v300 = vpop.f32.mrb[0].mxu0
    %301 = vmatprep.mubr.f32.mxu0 0.0
    %302 = vmatmul.mubr.f32.gmra.mrb[0].mxu0 %v161
    %v303 = vpop.f32.mrb[0].mxu0
    %v304 = vadd.f32 0.0, %v303
    %v305 = vpop.f32.mrb[0].mxu0
    %306 = vmatprep.mubr.f32.mxu0 0.0
    %307 = vmatmul.mubr.f32.gmra.mrb[0].mxu0 %v162
    %v308 = vpop.f32.mrb[0].mxu0
    %v309 = vadd.f32 0.0, %v308
    %v310 = vpop.f32.mrb[0].mxu0
    %311 = vmatprep.mubr.f32.mxu0 0.0
    %312 = vmatmul.mubr.f32.gmra.mrb[0].mxu0 %v163
    %v313 = vpop.f32.mrb[0].mxu0
    %v314 = vadd.f32 0.0, %v313
    %v315 = vpop.f32.mrb[0].mxu0
    %316 = vmatprep.mubr.f32.mxu0 0.0
    %317 = vmatmul.mubr.f32.gmra.mrb[0].mxu0 %v164
    %v318 = vpop.f32.mrb[0].mxu0
    %v319 = vadd.f32 0.0, %v318
    %v320 = vpop.f32.mrb[0].mxu0
    %321 = vmatprep.mubr.f32.mxu0 0.0
    %322 = vmatmul.mubr.f32.gmra.mrb[0].mxu0 %v165
    %v323 = vpop.f32.mrb[0].mxu0
    %v324 = vadd.f32 0.0, %v323
    %v325 = vpop.f32.mrb[0].mxu0
    %326 = vdwg.mxu0
    %v327 = vpack.c.bf16 %v254, %v249
    %v328 = vpack.c.bf16 %v264, %v259
    %v329 = vpack.c.bf16 %v274, %v269
    %v330 = vpack.c.bf16 %v284, %v279
    %v331 = vpack.c.bf16 %v294, %v289
    %v332 = vpack.c.bf16 %v304, %v299
    %v333 = vpack.c.bf16 %v314, %v309
    %v334 = vpack.c.bf16 %v324, %v319
    %v343 = vunpack.c.l.b16 %v327
    %v344 = vunpack.c.h.b16 %v327
    %v345 = vunpack.c.l.b16 %v328
    %v346 = vunpack.c.h.b16 %v328
    %v347 = vunpack.c.l.b16 %v329
    %v348 = vunpack.c.h.b16 %v329
    %v349 = vunpack.c.l.b16 %v330
    %v350 = vunpack.c.h.b16 %v330
    %v351 = vunpack.c.l.b16 %v331
    %v352 = vunpack.c.h.b16 %v331
    %v353 = vunpack.c.l.b16 %v332
    %v354 = vunpack.c.h.b16 %v332
    %v355 = vunpack.c.l.b16 %v333
    %v356 = vunpack.c.h.b16 %v333
    %v357 = vunpack.c.l.b16 %v334
    %v358 = vunpack.c.h.b16 %v334
    %v359 = vpack.c.b16 %v343, %v343
    %v360 = vpack.c.b16 %v344, %v344
    %v361 = vpack.c.b16 %v345, %v345
    %v362 = vpack.c.b16 %v346, %v346
    %v363 = vpack.c.b16 %v347, %v347
    %v364 = vpack.c.b16 %v348, %v348
    %v365 = vpack.c.b16 %v349, %v349
    %v366 = vpack.c.b16 %v350, %v350
    %v367 = vpack.c.b16 %v351, %v351
    %v368 = vpack.c.b16 %v352, %v352
    %v369 = vpack.c.b16 %v353, %v353
    %v370 = vpack.c.b16 %v354, %v354
    %v371 = vpack.c.b16 %v355, %v355
    %v372 = vpack.c.b16 %v356, %v356
    %v373 = vpack.c.b16 %v357, %v357
    %v374 = vpack.c.b16 %v358, %v358
    %391 = vst [vmem:[#allocation7] sm:$0xf] %v359
    %392 = vst [vmem:[#allocation7 + $0x4] sm:$0xf] %v360
    %393 = vst [vmem:[#allocation7 + $0x8] sm:$0xf] %v361
    %394 = vst [vmem:[#allocation7 + $0xc] sm:$0xf] %v362
    %395 = vst [vmem:[#allocation7 + $0x10] sm:$0xf] %v363
    %396 = vst [vmem:[#allocation7 + $0x14] sm:$0xf] %v364
    %397 = vst [vmem:[#allocation7 + $0x18] sm:$0xf] %v365
    %398 = vst [vmem:[#allocation7 + $0x1c] sm:$0xf] %v366
    %399 = vst [vmem:[#allocation7 + $0x20] sm:$0xf] %v367
    %400 = vst [vmem:[#allocation7 + $0x24] sm:$0xf] %v368
    %401 = vst [vmem:[#allocation7 + $0x28] sm:$0xf] %v369
    %402 = vst [vmem:[#allocation7 + $0x2c] sm:$0xf] %v370
    %403 = vst [vmem:[#allocation7 + $0x30] sm:$0xf] %v371
    %404 = vst [vmem:[#allocation7 + $0x34] sm:$0xf] %v372
    %405 = vst [vmem:[#allocation7 + $0x38] sm:$0xf] %v373
    %406 = vst [vmem:[#allocation7 + $0x3c] sm:$0xf] %v374
    // Predicated region
    $region30: #{tpu_custom_call.1} parent=1 // pred_check
      _
    $region31: #{tpu_custom_call.1} parent=1 // pred_check_branch
      %408 = sbr.rel (0) target = $region33
    $region32: #{tpu_custom_call.1} parent=1 // pred_region
      %s410 = ssub.s32 1024, 1024
      %411 = vsyncadd [#allocation4], %s410
      %s412 = sshll.u32 [#allocation7], 4
      %s413 = int_to_ptr.vmem [resolvable:$true] %s412
      %418 = dma.vmem_to_hbm [thread:$0]  %s413, 1024, %s5, [#allocation4], 64, 64, 4
    $region33: #{tpu_custom_call.1} parent=1 // pred_fallthru
      _
    // Predicated region
    $region34: #{tpu_custom_call.1} parent=1 // pred_check
      _
    $region35: #{tpu_custom_call.1} parent=1 // pred_check_branch
      %420 = sbr.rel (0) target = $region37
    $region36: #{tpu_custom_call.1} parent=1 // pred_region
      %421 = dma.done [#allocation4], 1024
    $region37: #{tpu_custom_call.1} parent=1 // pred_fallthru
      _
    %422 = vsyncpa [#allocation3], 1
    %423 = vsyncpa [#allocation6], 1
    %424 = vsyncpa [#allocation4], 1

</llo_original>
